<compile_context>
chip_gen: v6e
topology: v6e:2x2x1
jax: 0.10.0
libtpu: 0.0.40
codegen_flags: <defaults>
</compile_context>

<pallas_src>
import functools
import math

import jax
import jax.numpy as jnp
from jax import lax
from jax.experimental import pallas as pl
from jax.experimental.pallas import tpu as pltpu

# Set to jnp.bfloat16 on v6e/v7x to feed the MXU in bf16 (accumulation stays f32).
# Default f32 preserves reference numerics and keeps v5e VPU/EUP (no bf16) happy.
MATMUL_INPUT_DTYPE = jnp.float32


# ------------------------------------------------------------------ helpers

def _round_up(x, m):
    return ((x + m - 1) // m) * m


def _pick_tile(dim, align, max_tile):
    """Largest tile <= max_tile that is `align`-aligned and (if possible) divides the padded dim."""
    dim_a = _round_up(dim, align)
    if dim_a <= max_tile:
        return dim_a
    for t in range(max_tile, align - 1, -align):
        if dim_a % t == 0:
            return t
    return max_tile


def _pad2d(a, rows, cols, value=0):
    r, c = a.shape
    if r == rows and c == cols:
        return a
    return jnp.pad(a, ((0, rows - r), (0, cols - c)), constant_values=value)


# ------------------------------------------------------------------ kernels

def linear_kernel(x_ref, w_ref, b_ref, o_ref, acc_ref, *, activation=None):
    # x: [tm, tk], w: [tk, tn], b: [1, tn] -> o: [tm, tn]; K is the last (arbitrary) grid axis.
    @pl.when(pl.program_id(2) == 0)
    def _():
        acc_ref[...] = jnp.zeros_like(acc_ref)

    acc_ref[...] += jnp.dot(x_ref[...], w_ref[...],
                            preferred_element_type=jnp.float32)

    @pl.when(pl.program_id(2) == pl.num_programs(2) - 1)
    def _():
        y = acc_ref[...] + b_ref[...]
        if activation == "gelu":
            # BERT intermediate activation (tanh-approx GELU for robust lowering).
            y = jax.nn.gelu(y, approximate=True)
        o_ref[...] = y.astype(o_ref.dtype)


def _ln(x, g, b, eps):
    mean = jnp.mean(x, axis=-1, keepdims=True)
    var = jnp.mean(jnp.square(x - mean), axis=-1, keepdims=True)
    return (x - mean) * lax.rsqrt(var + eps) * g + b


def layernorm_kernel(x_ref, g_ref, b_ref, o_ref, *, eps):
    x = x_ref[...].astype(jnp.float32)
    o_ref[...] = _ln(x, g_ref[...], b_ref[...], eps).astype(o_ref.dtype)


def add_layernorm_kernel(x_ref, r_ref, g_ref, b_ref, o_ref, *, eps):
    # Fused residual add + LayerNorm (saves an HBM round trip of the residual sum).
    x = x_ref[...].astype(jnp.float32) + r_ref[...].astype(jnp.float32)
    o_ref[...] = _ln(x, g_ref[...], b_ref[...], eps).astype(o_ref.dtype)


def embed_layernorm_kernel(w_ref, p_ref, g_ref, b_ref, o_ref, *, eps):
    # Fused (word + position + token_type) add + LayerNorm, one batch element per grid step.
    x = w_ref[0].astype(jnp.float32) + p_ref[...].astype(jnp.float32)   # [S, H]
    o_ref[0] = _ln(x, g_ref[...], b_ref[...], eps).astype(o_ref.dtype)


def attention_kernel(qkv_ref, o_ref, *, num_heads, hidden, scale):
    # Per-batch block [1, S, 3H]; q/k/v and heads are sliced inside so the HBM read is a single
    # lane-dense block and no intermediate q/k/v tensors are materialized in HBM.
    qkv = qkv_ref[0].astype(jnp.float32)            # [S, 3H]
    H = hidden
    dh = H // num_heads
    q = qkv[:, 0:H] * scale                         # scale folded into q once
    k = qkv[:, H:2 * H]
    v = qkv[:, 2 * H:3 * H]
    outs = []
    for h in range(num_heads):
        sl = slice(h * dh, (h + 1) * dh)
        qs, ks, vs = q[:, sl], k[:, sl], v[:, sl]
        s = jnp.dot(qs, ks.T, preferred_element_type=jnp.float32)        # [S, S]
        m = jnp.max(s, axis=-1, keepdims=True)
        p = jnp.exp(s - m)
        p = p * pl.reciprocal(jnp.sum(p, axis=-1, keepdims=True), approx=True)
        outs.append(jnp.dot(p, vs, preferred_element_type=jnp.float32))
    o_ref[0] = jnp.concatenate(outs, axis=-1).astype(o_ref.dtype)


def ce_loss_kernel(logits_ref, labels_ref, loss_ref, sum_ref, cnt_ref):
    # CrossEntropyLoss(ignore_index=-1), reduction='mean'; row-tiled with resident accumulators.
    step = pl.program_id(0)

    @pl.when(step == 0)
    def _():
        sum_ref[...] = jnp.zeros_like(sum_ref)
        cnt_ref[...] = jnp.zeros_like(cnt_ref)

    logits = logits_ref[...].astype(jnp.float32)        # [tr, C]
    labels = labels_ref[...]                            # [tr, 1] int32
    m = jnp.max(logits, axis=-1, keepdims=True)
    lse = jnp.log(jnp.sum(jnp.exp(logits - m), axis=-1, keepdims=True)) + m
    iota_c = lax.broadcasted_iota(jnp.int32, logits.shape, 1)
    onehot = (iota_c == labels).astype(jnp.float32)
    picked = jnp.sum(onehot * logits, axis=-1, keepdims=True)
    valid = (labels > -1).astype(jnp.float32)
    per_tok = (lse - picked) * valid                    # [tr, 1]
    sum_ref[...] += jnp.sum(per_tok, axis=0, keepdims=True)
    cnt_ref[...] += jnp.sum(valid, axis=0, keepdims=True)

    @pl.when(step == pl.num_programs(0) - 1)
    def _():
        loss_ref[...] = sum_ref[...] / jnp.maximum(cnt_ref[...], 1.0)


# ------------------------------------------------------------------ wrappers

def pallas_linear(x, w, b, activation=None):
    M, K = x.shape
    N = w.shape[1]
    tm = _pick_tile(M, 8, 256)
    tn = _pick_tile(N, 128, 256)
    tk = _pick_tile(K, 128, 512)
    Mp, Kp, Np = _round_up(M, tm), _round_up(K, tk), _round_up(N, tn)

    xp = _pad2d(x, Mp, Kp).astype(MATMUL_INPUT_DTYPE)
    wp = _pad2d(w, Kp, Np).astype(MATMUL_INPUT_DTYPE)
    bp = _pad2d(b.reshape(1, N), 1, Np).astype(jnp.float32)

    kern = functools.partial(linear_kernel, activation=activation)
    out = pl.pallas_call(
        kern,
        out_shape=jax.ShapeDtypeStruct((Mp, Np), jnp.float32),
        grid=(Mp // tm, Np // tn, Kp // tk),
        in_specs=[pl.BlockSpec((tm, tk), lambda i, j, k: (i, k)),
                  pl.BlockSpec((tk, tn), lambda i, j, k: (k, j)),
                  pl.BlockSpec((1, tn), lambda i, j, k: (0, j))],
        out_specs=pl.BlockSpec((tm, tn), lambda i, j, k: (i, j)),
        scratch_shapes=[pltpu.VMEM((tm, tn), jnp.float32)],
        compiler_params=pltpu.CompilerParams(
            dimension_semantics=("parallel", "parallel", "arbitrary")),
    )(xp, wp, bp)
    if (Mp, Np) != (M, N):
        out = out[:M, :N]
    return out


def pallas_layernorm(x, gamma, beta, residual=None, eps=1e-12):
    M, H = x.shape
    tm = _pick_tile(M, 8, 512)
    Mp = _round_up(M, tm)
    xp = _pad2d(x, Mp, H)
    g2 = gamma.reshape(1, H)
    b2 = beta.reshape(1, H)

    row_spec = pl.BlockSpec((tm, H), lambda i: (i, 0))
    vec_spec = pl.BlockSpec((1, H), lambda i: (0, 0))
    if residual is None:
        kern = functools.partial(layernorm_kernel, eps=eps)
        in_specs = [row_spec, vec_spec, vec_spec]
        args = (xp, g2, b2)
    else:
        rp = _pad2d(residual, Mp, H)
        kern = functools.partial(add_layernorm_kernel, eps=eps)
        in_specs = [row_spec, row_spec, vec_spec, vec_spec]
        args = (xp, rp, g2, b2)

    out = pl.pallas_call(
        kern,
        out_shape=jax.ShapeDtypeStruct((Mp, H), jnp.float32),
        grid=(Mp // tm,),
        in_specs=in_specs,
        out_specs=row_spec,
        compiler_params=pltpu.CompilerParams(dimension_semantics=("parallel",)),
    )(*args)
    return out[:M] if Mp != M else out


def pallas_embed_layernorm(word, pos_typ, gamma, beta, eps=1e-12):
    # word: [B, S, H] gathered embeddings, pos_typ: [S, H] (position + token-type, pre-summed).
    B, S, H = word.shape
    kern = functools.partial(embed_layernorm_kernel, eps=eps)
    out = pl.pallas_call(
        kern,
        out_shape=jax.ShapeDtypeStruct((B, S, H), jnp.float32),
        grid=(B,),
        in_specs=[pl.BlockSpec((1, S, H), lambda b: (b, 0, 0)),
                  pl.BlockSpec((S, H), lambda b: (0, 0)),
                  pl.BlockSpec((1, H), lambda b: (0, 0)),
                  pl.BlockSpec((1, H), lambda b: (0, 0))],
        out_specs=pl.BlockSpec((1, S, H), lambda b: (b, 0, 0)),
        compiler_params=pltpu.CompilerParams(dimension_semantics=("parallel",)),
    )(word, pos_typ, gamma.reshape(1, H), beta.reshape(1, H))
    return out


def pallas_attention(qkv, num_heads, hidden):
    # qkv: [B, S, 3H] fused projection output; q/k/v + heads sliced inside the kernel.
    B, S, W = qkv.shape
    scale = 1.0 / math.sqrt(hidden // num_heads)
    kern = functools.partial(attention_kernel, num_heads=num_heads,
                             hidden=hidden, scale=scale)
    return pl.pallas_call(
        kern,
        out_shape=jax.ShapeDtypeStruct((B, S, hidden), jnp.float32),
        grid=(B,),
        in_specs=[pl.BlockSpec((1, S, W), lambda b: (b, 0, 0))],
        out_specs=pl.BlockSpec((1, S, hidden), lambda b: (b, 0, 0)),
        compiler_params=pltpu.CompilerParams(dimension_semantics=("parallel",)),
    )(qkv)


def pallas_ce_loss(logits, labels):
    # logits: [N, C] f32, labels: [N] int32 (ignore_index=-1); row-tiled reduction.
    N, C = logits.shape
    tr = _pick_tile(N, 8, 512)
    Np = _round_up(N, tr)
    lp = _pad2d(logits, Np, C)
    lab = labels.reshape(N, 1).astype(jnp.int32)
    if Np != N:
        lab = jnp.pad(lab, ((0, Np - N), (0, 0)), constant_values=-1)

    out = pl.pallas_call(
        ce_loss_kernel,
        out_shape=jax.ShapeDtypeStruct((1, 1), jnp.float32),
        grid=(Np // tr,),
        in_specs=[pl.BlockSpec((tr, C), lambda i: (i, 0)),
                  pl.BlockSpec((tr, 1), lambda i: (i, 0))],
        out_specs=pl.BlockSpec((1, 1), lambda i: (0, 0)),
        scratch_shapes=[pltpu.VMEM((1, 1), jnp.float32),
                        pltpu.VMEM((1, 1), jnp.float32)],
        compiler_params=pltpu.CompilerParams(dimension_semantics=("arbitrary",)),
    )(lp, lab)
    return out[0, 0]


# ------------------------------------------------------------------ model

def init_params(key, cfg):
    H = cfg["embedding_dim"]
    I = cfg["intermediate_size"]
    V = cfg["vocab_size"]
    P = cfg["max_position_embeddings"]
    S = cfg["schema_size"]
    L = cfg["num_layers"]

    def nrm(k, shape, std=0.02):
        return jax.random.normal(k, shape, jnp.float32) * std

    keys = jax.random.split(key, 4 + 4 * L)
    kit = iter(keys)
    p = {
        "word_emb": nrm(next(kit), (V, H)),
        "pos_emb": nrm(next(kit), (P, H)),
        "type_emb": nrm(next(kit), (2, H)),
        "emb_ln_g": jnp.ones((H,), jnp.float32),
        "emb_ln_b": jnp.zeros((H,), jnp.float32),
        "cls_w": nrm(next(kit), (H, S)),
        "cls_b": jnp.zeros((S,), jnp.float32),
        "layers": [],
    }
    for _ in range(L):
        layer = {
            # Q/K/V projections fused into one [H, 3H] matmul.
            "qkv_w": nrm(next(kit), (H, 3 * H)), "qkv_b": jnp.zeros((3 * H,), jnp.float32),
            "o_w": nrm(next(kit), (H, H)), "o_b": jnp.zeros((H,), jnp.float32),
            "attn_ln_g": jnp.ones((H,), jnp.float32),
            "attn_ln_b": jnp.zeros((H,), jnp.float32),
            "ffn_in_w": nrm(next(kit), (H, I)), "ffn_in_b": jnp.zeros((I,), jnp.float32),
            "ffn_out_w": nrm(next(kit), (I, H)), "ffn_out_b": jnp.zeros((H,), jnp.float32),
            "ffn_ln_g": jnp.ones((H,), jnp.float32),
            "ffn_ln_b": jnp.zeros((H,), jnp.float32),
        }
        p["layers"].append(layer)
    return p


def bert_encode(params, token_ids, cfg):
    B, S = token_ids.shape
    H = cfg["embedding_dim"]
    nh = cfg["num_heads"]

    # embeddings: gather in XLA (glue); add + LayerNorm fused in one Pallas kernel
    word = jnp.take(params["word_emb"], token_ids, axis=0)                    # [B,S,H]
    pos_typ = params["pos_emb"][:S] + params["type_emb"][0][None, :]          # [S,H]
    h = pallas_embed_layernorm(word, pos_typ,
                               params["emb_ln_g"], params["emb_ln_b"]).reshape(B * S, H)

    for lp in params["layers"]:
        # fused QKV projection (one matmul, one HBM read of h)
        qkv = pallas_linear(h, lp["qkv_w"], lp["qkv_b"])                      # [B*S, 3H]
        # q/k/v + heads sliced inside the attention kernel (single HBM read of qkv)
        ctx = pallas_attention(qkv.reshape(B, S, 3 * H), nh, H).reshape(B * S, H)
        attn_out = pallas_linear(ctx, lp["o_w"], lp["o_b"])
        # residual add fused into the LayerNorm kernel
        h = pallas_layernorm(attn_out, lp["attn_ln_g"], lp["attn_ln_b"], residual=h)

        # feed-forward
        ff = pallas_linear(h, lp["ffn_in_w"], lp["ffn_in_b"], activation="gelu")
        ff = pallas_linear(ff, lp["ffn_out_w"], lp["ffn_out_b"])
        h = pallas_layernorm(ff, lp["ffn_ln_g"], lp["ffn_ln_b"], residual=h)

    return h  # [B*S, H]  (BERT sequence output, flattened)


def ner_forward(params, token_ids, cfg, true_y=None):
    """Mirrors Ner_Model.forward with use_crf=False."""
    B, S = token_ids.shape
    seq_out = bert_encode(params, token_ids, cfg)                      # [B*S, H]
    # classifier head: computed in a 128-lane-padded tile inside pallas_linear, sliced here
    logits_flat = pallas_linear(seq_out, params["cls_w"], params["cls_b"])
    predict_y = logits_flat.reshape(B, S, cfg["schema_size"])
    if true_y is not None:
        # self.loss(predict_y.reshape(-1, C), true_y.reshape(-1))
        return pallas_ce_loss(predict_y.reshape(-1, cfg["schema_size"]),
                              true_y.reshape(-1))
    return predict_y


# ------------------------------------------------------------------ main

if __name__ == "__main__":
    cfg = {
        "optim": "adam", "lr": 1e-3,
        "num_layers": 2,
        "embedding_dim": 32,
        "num_heads": 4,
        "intermediate_size": 64,
        "vocab_size": 100,
        "max_position_embeddings": 16,
        "schema_size": 8,
        "use_crf": False,           # TODO(synk): CRF (Viterbi DP) not implemented in Pallas
        "bert_path": "<synthetic>",
    }

    key = jax.random.PRNGKey(0)
    kp, kx, ky = jax.random.split(key, 3)
    params = init_params(kp, cfg)

    B, S = 2, 8
    token_ids = jax.random.randint(kx, (B, S), 0, cfg["vocab_size"], dtype=jnp.int32)
    true_y = jax.random.randint(ky, (B, S), -1, cfg["schema_size"], dtype=jnp.int32)

    # inference branch: returns predict_y logits [B, S, schema_size]
    logits = ner_forward(params, token_ids, cfg, true_y=None)
    logits = jax.block_until_ready(logits)
    assert logits.shape == (B, S, cfg["schema_size"])
    assert bool(jnp.all(jnp.isfinite(logits)))

    # training branch (use_crf=False): masked cross-entropy loss (scalar)
    loss = ner_forward(params, token_ids, cfg, true_y=true_y)
    loss = jax.block_until_ready(loss)
    assert loss.shape == () and jnp.isfinite(loss)

    print("KERNEL_OK")
</pallas_src>

<mosaic_0001>
module attributes {stable_mosaic.version = 11 : i64} {
  func.func @embed_layernorm_kernel(%arg0: i32, %arg1: memref<1x8x32xf32, #tpu.memory_space<vmem>>, %arg2: memref<8x32xf32, #tpu.memory_space<vmem>>, %arg3: memref<1x32xf32, #tpu.memory_space<vmem>>, %arg4: memref<1x32xf32, #tpu.memory_space<vmem>>, %arg5: memref<1x8x32xf32, #tpu.memory_space<vmem>>) attributes {dimension_semantics = [#tpu.dimension_semantics<parallel>], iteration_bounds = array<i64: 2>, scalar_prefetch = 0 : i64, scratch_operands = 0 : i64, tpu.core_type = #tpu.core_type<tc>, window_params = [{transform_indices = @transform_0, window_bounds = array<i64: 1, 8, 32>}, {pipeline_mode = #tpu.pipeline_mode<synchronous>, transform_indices = @transform_1, window_bounds = array<i64: 8, 32>}, {pipeline_mode = #tpu.pipeline_mode<synchronous>, transform_indices = @transform_2, window_bounds = array<i64: 1, 32>}, {pipeline_mode = #tpu.pipeline_mode<synchronous>, transform_indices = @transform_3, window_bounds = array<i64: 1, 32>}, {transform_indices = @transform_4, window_bounds = array<i64: 1, 8, 32>}]} {
    %c0 = arith.constant 0 : index
    %c0_0 = arith.constant 0 : index
    %c0_1 = arith.constant 0 : index
    %0 = vector.load %arg1[%c0, %c0_0, %c0_1] : memref<1x8x32xf32, #tpu.memory_space<vmem>>, vector<1x8x32xf32>
    %1 = vector.shape_cast %0 : vector<1x8x32xf32> to vector<8x32xf32>
    %c0_2 = arith.constant 0 : index
    %c0_3 = arith.constant 0 : index
    %2 = vector.load %arg2[%c0_2, %c0_3] : memref<8x32xf32, #tpu.memory_space<vmem>>, vector<8x32xf32>
    %3 = arith.addf %1, %2 : vector<8x32xf32>
    %c0_4 = arith.constant 0 : index
    %c0_5 = arith.constant 0 : index
    %4 = vector.load %arg3[%c0_4, %c0_5] : memref<1x32xf32, #tpu.memory_space<vmem>>, vector<1x32xf32>
    %c0_6 = arith.constant 0 : index
    %c0_7 = arith.constant 0 : index
    %5 = vector.load %arg4[%c0_6, %c0_7] : memref<1x32xf32, #tpu.memory_space<vmem>>, vector<1x32xf32>
    %cst = arith.constant dense<0.000000e+00> : vector<8xf32>
    %6 = vector.multi_reduction <add>, %3, %cst [1] : vector<8x32xf32> to vector<8xf32>
    %7 = vector.shape_cast %6 : vector<8xf32> to vector<8x1xf32>
    %cst_8 = arith.constant 3.200000e+01 : f32
    %8 = vector.broadcast %cst_8 : f32 to vector<8x1xf32>
    %9 = arith.divf %7, %8 : vector<8x1xf32>
    %10 = vector.broadcast %9 : vector<8x1xf32> to vector<8x32xf32>
    %11 = arith.subf %3, %10 : vector<8x32xf32>
    %12 = arith.mulf %11, %11 : vector<8x32xf32>
    %cst_9 = arith.constant dense<0.000000e+00> : vector<8xf32>
    %13 = vector.multi_reduction <add>, %12, %cst_9 [1] : vector<8x32xf32> to vector<8xf32>
    %14 = vector.shape_cast %13 : vector<8xf32> to vector<8x1xf32>
    %cst_10 = arith.constant 3.200000e+01 : f32
    %15 = vector.broadcast %cst_10 : f32 to vector<8x1xf32>
    %16 = arith.divf %14, %15 : vector<8x1xf32>
    %17 = vector.broadcast %9 : vector<8x1xf32> to vector<8x32xf32>
    %18 = arith.subf %3, %17 : vector<8x32xf32>
    %cst_11 = arith.constant 9.99999996E-13 : f32
    %19 = vector.broadcast %cst_11 : f32 to vector<8x1xf32>
    %20 = arith.addf %16, %19 : vector<8x1xf32>
    %21 = math.rsqrt %20 : vector<8x1xf32>
    %22 = vector.broadcast %21 : vector<8x1xf32> to vector<8x32xf32>
    %23 = arith.mulf %18, %22 : vector<8x32xf32>
    %24 = vector.broadcast %4 : vector<1x32xf32> to vector<8x32xf32>
    %25 = arith.mulf %23, %24 : vector<8x32xf32>
    %26 = vector.broadcast %5 : vector<1x32xf32> to vector<8x32xf32>
    %27 = arith.addf %25, %26 : vector<8x32xf32>
    %c0_12 = arith.constant 0 : index
    %c0_13 = arith.constant 0 : index
    %c0_14 = arith.constant 0 : index
    %28 = vector.load %arg5[%c0_12, %c0_13, %c0_14] : memref<1x8x32xf32, #tpu.memory_space<vmem>>, vector<1x8x32xf32>
    %29 = vector.shape_cast %28 : vector<1x8x32xf32> to vector<8x32xf32>
    %30 = vector.shape_cast %27 : vector<8x32xf32> to vector<1x8x32xf32>
    tpu.vector_store %arg5[%c0_12, %c0_13, %c0_14], %30 {strides = array<i32>} : memref<1x8x32xf32, #tpu.memory_space<vmem>>, vector<1x8x32xf32>,
    return
  }
  func.func @transform_0(%arg0: i32) -> (i32, i32, i32) {
    %c0_i32 = arith.constant 0 : i32
    %c0_i32_0 = arith.constant 0 : i32
    %c0_i32_1 = arith.constant 0 : i32
    return %arg0, %c0_i32, %c0_i32_0 : i32, i32, i32
  }
  func.func @transform_1(%arg0: i32) -> (i32, i32) {
    %c0_i32 = arith.constant 0 : i32
    %c0_i32_0 = arith.constant 0 : i32
    %c0_i32_1 = arith.constant 0 : i32
    return %c0_i32, %c0_i32_0 : i32, i32
  }
  func.func @transform_2(%arg0: i32) -> (i32, i32) {
    %c0_i32 = arith.constant 0 : i32
    %c0_i32_0 = arith.constant 0 : i32
    %c0_i32_1 = arith.constant 0 : i32
    return %c0_i32, %c0_i32_0 : i32, i32
  }
  func.func @transform_3(%arg0: i32) -> (i32, i32) {
    %c0_i32 = arith.constant 0 : i32
    %c0_i32_0 = arith.constant 0 : i32
    %c0_i32_1 = arith.constant 0 : i32
    return %c0_i32, %c0_i32_0 : i32, i32
  }
  func.func @transform_4(%arg0: i32) -> (i32, i32, i32) {
    %c0_i32 = arith.constant 0 : i32
    %c0_i32_0 = arith.constant 0 : i32
    %c0_i32_1 = arith.constant 0 : i32
    return %arg0, %c0_i32, %c0_i32_0 : i32, i32, i32
  }
}

</mosaic_0001>

<llo_original>
// kernel: tpu_custom_call.1
$region0: #{tpu_custom_call.1}
  #allocation0 [shape = 'u32[]', space=smem, size = 0x4, offset = 0x4, fixed_abs, tag = 'smem constant byte address 0x4 - core index']
  #allocation1 [shape = 'u32[144,128]{1,0:T(1,128)}', space=vmem, size = 0x12000, scoped, tag = 'internal scratch']
  %s0 = inlined_call_operand.hbm [shape: f32[2,8,32], index: 0, kind: input, shape index: {}]
  %s1 = inlined_call_operand.hbm [shape: f32[8,32], index: 1, kind: input, shape index: {}]
  %s2 = inlined_call_operand.vmem [shape: f32[1,32], index: 2, kind: input, shape index: {}]
  %s3 = inlined_call_operand.vmem [shape: f32[1,32], index: 3, kind: input, shape index: {}]
  %s4 = inlined_call_operand.hbm [shape: f32[2,8,32], index: 4, kind: output, shape index: {}]
  %s5 = sld [smem:[#allocation0]]
  $region57: #{tpu_custom_call.1} parent=0
    _
  %s7 = ssub.s32 1, %s5
  %s8 = scalar_select 0, %s7, %s5
  $region1: #{tpu_custom_call.1} parent=0
    #allocation2 [shape = 'u8[8192]{0}', space=vmem, size = 0x2000, scoped, tag = 'input window, operand 0']
    #allocation3 [shape = 's32[2]{0}', space=sflag, size = 0x8, scoped, tag = 'scoped memory for tpu_custom_call.1']
    #allocation4 [shape = 's32[2]{0}', space=sflag, size = 0x8, scoped, tag = 'scoped memory for tpu_custom_call.1']
    #allocation5 [shape = 'u8[4096]{0}', space=vmem, size = 0x1000, scoped, tag = 'input window, operand 1, single buffered']
    #allocation6 [shape = 's32[1]{0}', space=sflag, size = 0x4, scoped, tag = 'scoped memory for tpu_custom_call.1']
    #allocation7 [shape = 'u8[8192]{0}', space=vmem, size = 0x2000, scoped, tag = 'output window, operand 0']
    %9 = vsyncpa [#allocation3], 0
    %s10 = scalar_lea.sflag [#allocation3], 1
    %11 = vsyncpa %s10, 0
    %12 = vsyncpa [#allocation6], 0
    %13 = vsyncpa [#allocation4], 0
    %s14 = scalar_lea.sflag [#allocation4], 1
    %15 = vsyncpa %s14, 0
    loop: start=0, step=1, limit=4
    $region2: #{tpu_custom_call.1} parent=1 // loop_pre_header
      _
    $region3: #{tpu_custom_call.1} parent=1 // loop_header
      %s17 = sphi 0, %s21
      %p18 = scmp.ge.s32.totalorder %s17, 4
      %s27 = sphi 0, %s29
      %s30 = sphi 0, %s27
      %s31 = sphi 0, %s30
      %s47 = sphi 0, %s31
      %s51 = sphi 0, %s51
      %s53 = sphi 0, %s51
      %s54 = sphi 0, %s53
      %s68 = sphi 0, %s54
      %s72 = sphi 0, %s72
      %s74 = sphi 0, %s72
      %s75 = sphi 0, %s74
      %s89 = sphi 0, %s75
      %s93 = sphi 0, %s93
      %s95 = sphi 0, %s93
      %s96 = sphi 0, %s95
      %s110 = sphi 0, %s96
      %s116 = sphi 0, %s118
      %s119 = sphi 0, %s116
      %s120 = sphi 0, %s119
      %s136 = sphi 0, %s120
    $region4: #{tpu_custom_call.1} parent=1 // loop_header_branch
      %20 = sbr.rel (%p18) target = $region8
    $region5: #{tpu_custom_call.1} parent=1 // loop_body
      %s22 = ssub.s32 %s17, 1
      %s23 = ssub.s32 %s17, 2
      %s24 = sadd.s32 %s17, 1
      %s25 = ssub.s32 %s17, %s24
      %p26 = scmp.eq.s32.totalorder %s25, 0
      %s28 = sadd.s32 %s27, 1
      %s29 = scalar_select %p26, %s27, %s28
      %p32 = pneg %p26
      %p33 = scmp.eq.s32.totalorder %s17, 1
      %p34 = por %p32, %p33
      %p35 = scmp.ne.s32.totalorder %s27, %s30
      %p36 = scmp.eq.s32.totalorder %s17, 0
      %p37 = por %p35, %p36
      %p38 = scmp.ne.s32.totalorder %s27, %s30
      %p39 = scmp.eq.s32.totalorder %s22, 1
      %p40 = por %p38, %p39
      %p41 = scmp.ne.s32.totalorder %s30, %s31
      %p42 = scmp.eq.s32.totalorder %s22, 0
      %p43 = por %p41, %p42
      %p44 = scmp.ne.s32.totalorder %s30, %s31
      %p45 = scmp.eq.s32.totalorder %s23, 1
      %p46 = por %p44, %p45
      %p48 = scmp.ne.s32.totalorder %s31, %s47
      %p49 = scmp.eq.s32.totalorder %s23, 0
      %p50 = por %p48, %p49
      %s52 = sadd.s32 %s51, 1
      %p55 = scmp.eq.s32.totalorder %s17, 1
      %p56 = scmp.ne.s32.totalorder %s51, %s53
      %p57 = scmp.eq.s32.totalorder %s17, 0
      %p58 = por %p56, %p57
      %p59 = scmp.ne.s32.totalorder %s51, %s53
      %p60 = scmp.eq.s32.totalorder %s22, 1
      %p61 = por %p59, %p60
      %p62 = scmp.ne.s32.totalorder %s53, %s54
      %p63 = scmp.eq.s32.totalorder %s22, 0
      %p64 = por %p62, %p63
      %p65 = scmp.ne.s32.totalorder %s53, %s54
      %p66 = scmp.eq.s32.totalorder %s23, 1
      %p67 = por %p65, %p66
      %p69 = scmp.ne.s32.totalorder %s54, %s68
      %p70 = scmp.eq.s32.totalorder %s23, 0
      %p71 = por %p69, %p70
      %s73 = sadd.s32 %s72, 1
      %p76 = scmp.eq.s32.totalorder %s17, 1
      %p77 = scmp.ne.s32.totalorder %s72, %s74
      %p78 = scmp.eq.s32.totalorder %s17, 0
      %p79 = por %p77, %p78
      %p80 = scmp.ne.s32.totalorder %s72, %s74
      %p81 = scmp.eq.s32.totalorder %s22, 1
      %p82 = por %p80, %p81
      %p83 = scmp.ne.s32.totalorder %s74, %s75
      %p84 = scmp.eq.s32.totalorder %s22, 0
      %p85 = por %p83, %p84
      %p86 = scmp.ne.s32.totalorder %s74, %s75
      %p87 = scmp.eq.s32.totalorder %s23, 1
      %p88 = por %p86, %p87
      %p90 = scmp.ne.s32.totalorder %s75, %s89
      %p91 = scmp.eq.s32.totalorder %s23, 0
      %p92 = por %p90, %p91
      %s94 = sadd.s32 %s93, 1
      %p97 = scmp.eq.s32.totalorder %s17, 1
      %p98 = scmp.ne.s32.totalorder %s93, %s95
      %p99 = scmp.eq.s32.totalorder %s17, 0
      %p100 = por %p98, %p99
      %p101 = scmp.ne.s32.totalorder %s93, %s95
      %p102 = scmp.eq.s32.totalorder %s22, 1
      %p103 = por %p101, %p102
      %p104 = scmp.ne.s32.totalorder %s95, %s96
      %p105 = scmp.eq.s32.totalorder %s22, 0
      %p106 = por %p104, %p105
      %p107 = scmp.ne.s32.totalorder %s95, %s96
      %p108 = scmp.eq.s32.totalorder %s23, 1
      %p109 = por %p107, %p108
      %p111 = scmp.ne.s32.totalorder %s96, %s110
      %p112 = scmp.eq.s32.totalorder %s23, 0
      %p113 = por %p111, %p112
      %s114 = ssub.s32 %s17, %s24
      %p115 = scmp.eq.s32.totalorder %s114, 0
      %s117 = sadd.s32 %s116, 1
      %s118 = scalar_select %p115, %s116, %s117
      %p121 = pneg %p115
      %p122 = scmp.eq.s32.totalorder %s17, 1
      %p123 = por %p121, %p122
      %p124 = scmp.ne.s32.totalorder %s116, %s119
      %p125 = scmp.eq.s32.totalorder %s17, 0
      %p126 = por %p124, %p125
      %p127 = scmp.ne.s32.totalorder %s116, %s119
      %p128 = scmp.eq.s32.totalorder %s22, 1
      %p129 = por %p127, %p128
      %p130 = scmp.ne.s32.totalorder %s119, %s120
      %p131 = scmp.eq.s32.totalorder %s22, 0
      %p132 = por %p130, %p131
      %p133 = scmp.ne.s32.totalorder %s119, %s120
      %p134 = scmp.eq.s32.totalorder %s23, 1
      %p135 = por %p133, %p134
      %p137 = scmp.ne.s32.totalorder %s120, %s136
      %p138 = scmp.eq.s32.totalorder %s23, 0
      %p139 = por %p137, %p138
      %p140 = scmp.le.s32.totalorder 1, %s17
      %p141 = scmp.lt.s32.totalorder %s17, 3
      %p142 = pnand %p140, %p141
      %p143 = pneg %p142
      // Predicated region
      $region9: #{tpu_custom_call.1} parent=5 // pred_check
        _
      $region10: #{tpu_custom_call.1} parent=5 // pred_check_branch
        %145 = sbr.rel (%p142) target = $region12
      $region11: #{tpu_custom_call.1} parent=5 // pred_region
        %s146 = ssub.s32 %s17, 1
        // Predicated region
        $region13: #{tpu_custom_call.1} parent=11 // pred_check
          %p147 = pneg %p64
        $region14: #{tpu_custom_call.1} parent=11 // pred_check_branch
          %149 = sbr.rel (%p147) target = $region16
        $region15: #{tpu_custom_call.1} parent=11 // pred_region
          %s151 = ssub.s32 128, 128
          %152 = vsyncadd [#allocation6], %s151
          %s154 = sshll.u32 [#allocation5], 4
          %s155 = int_to_ptr.vmem [resolvable:$true] %s154
          %157 = dma.hbm_to_vmem [thread:$0]  %s1, 128, %s155, [#allocation6]
        $region16: #{tpu_custom_call.1} parent=11 // pred_fallthru
          _
        // Predicated region
        $region17: #{tpu_custom_call.1} parent=11 // pred_check
          %p158 = pneg %p85
        $region18: #{tpu_custom_call.1} parent=11 // pred_check_branch
          %160 = sbr.rel (%p158) target = $region20
        $region19: #{tpu_custom_call.1} parent=11 // pred_region
          _
        $region20: #{tpu_custom_call.1} parent=11 // pred_fallthru
          _
        // Predicated region
        $region21: #{tpu_custom_call.1} parent=11 // pred_check
          %p161 = pneg %p106
        $region22: #{tpu_custom_call.1} parent=11 // pred_check_branch
          %163 = sbr.rel (%p161) target = $region24
        $region23: #{tpu_custom_call.1} parent=11 // pred_region
          _
        $region24: #{tpu_custom_call.1} parent=11 // pred_fallthru
          _
      $region12: #{tpu_custom_call.1} parent=5 // pred_fallthru
        _
      %p164 = scmp.lt.s32.totalorder %s17, 2
      // Predicated region
      $region25: #{tpu_custom_call.1} parent=5 // pred_check
        %p165 = pneg %p164
      $region26: #{tpu_custom_call.1} parent=5 // pred_check_branch
        %167 = sbr.rel (%p165) target = $region28
      $region27: #{tpu_custom_call.1} parent=5 // pred_region
        // Predicated region
        $region29: #{tpu_custom_call.1} parent=27 // pred_check
          %p168 = pneg %p37
        $region30: #{tpu_custom_call.1} parent=27 // pred_check_branch
          %170 = sbr.rel (%p168) target = $region32
        $region31: #{tpu_custom_call.1} parent=27 // pred_region
          %s171 = sand.u32 %s27, 1
          %s172 = scalar_lea.sflag [#allocation3], %s171
          %s173 = sand.u32 %s27, 1
          %s174 = smul.addr %s173, 8
          %s175 = scalar_lea.vmem [#allocation2], %s174
          %s177 = ssub.s32 128, 128
          %178 = vsyncadd %s172, %s177
          %s179 = smul.addr %s17, 128
          %s180 = scalar_lea.hbm %s0, %s179
          %s182 = sshll.u32 %s175, 4
          %s183 = int_to_ptr.vmem [resolvable:$true] %s182
          %185 = dma.hbm_to_vmem [thread:$0]  %s180, 128, %s183, %s172
        $region32: #{tpu_custom_call.1} parent=27 // pred_fallthru
          _
      $region28: #{tpu_custom_call.1} parent=5 // pred_fallthru
        _
      %p186 = scmp.le.s32.totalorder 1, %s17
      %p187 = scmp.lt.s32.totalorder %s17, 3
      %p188 = pnand %p186, %p187
      %p189 = pneg %p188
      // Predicated region
      $region33: #{tpu_custom_call.1} parent=5 // pred_check
        _
      $region34: #{tpu_custom_call.1} parent=5 // pred_check_branch
        %191 = sbr.rel (%p188) target = $region36
      $region35: #{tpu_custom_call.1} parent=5 // pred_region
        %s192 = ssub.s32 %s17, 1
        %s193 = sand.u32 %s30, 1
        %s194 = scalar_lea.sflag [#allocation3], %s193
        %s195 = sand.u32 %s30, 1
        %s196 = smul.addr %s195, 8
        %s197 = scalar_lea.vmem [#allocation2], %s196
        // Predicated region
        $region37: #{tpu_custom_call.1} parent=35 // pred_check
          %p198 = pneg %p43
        $region38: #{tpu_custom_call.1} parent=35 // pred_check_branch
          %200 = sbr.rel (%p198) target = $region40
        $region39: #{tpu_custom_call.1} parent=35 // pred_region
          %201 = dma.done %s194, 128
        $region40: #{tpu_custom_call.1} parent=35 // pred_fallthru
          _
        // Predicated region
        $region41: #{tpu_custom_call.1} parent=35 // pred_check
          %p202 = pneg %p64
        $region42: #{tpu_custom_call.1} parent=35 // pred_check_branch
          %204 = sbr.rel (%p202) target = $region44
        $region43: #{tpu_custom_call.1} parent=35 // pred_region
          %205 = dma.done [#allocation6], 128
        $region44: #{tpu_custom_call.1} parent=35 // pred_fallthru
          _
        %s206 = sand.u32 %s30, 1
        %s207 = scalar_lea.sflag [#allocation3], %s206
        %s208 = sand.u32 %s30, 1
        %s209 = smul.addr %s208, 8
        %s210 = scalar_lea.vmem [#allocation2], %s209
        %p211 = pneg %p43
        %p212 = pneg %p40
        %p213 = pneg %p64
        %p214 = pneg %p61
        %p215 = pneg %p85
        %p216 = pneg %p82
        %p217 = pneg %p106
        %p218 = pneg %p103
        %p219 = pneg %p132
        %p220 = pneg %p129
        %s221 = sand.u32 %s119, 1
        %s222 = scalar_lea.sflag [#allocation4], %s221
        %s223 = sand.u32 %s119, 1
        %s224 = smul.addr %s223, 8
        %s225 = scalar_lea.vmem [#allocation7], %s224
        %v226 = vld [vmem:[%s197] sm:$0xff]
        %v227 = vld [vmem:[#allocation5] sm:$0xff]
        %v228 = vadd.f32 %v226, %v227
        %v229 = vld [vmem:[%s2] sm:$0x1]
        %v230 = vld [vmem:[%s3] sm:$0x1]
        %vm231 = vcmask 261120
        %v232 = vsel %vm231, %v228, 0.0
        %233 = vadd.xlane.f32.xlu0 %v232
        %v234 = vpop.xlane.xlu0 %233
        %v235 = vrcp.pop 32.0
        %v236 = vmul.f32 %v234, %v235
        %v237 = vsub.f32 %v228, %v236
        %v238 = vmul.f32 %v237, %v237
        %v239 = vsel %vm231, %v238, 0.0
        %240 = vadd.xlane.f32.xlu0 %v239
        %v241 = vpop.xlane.xlu0 %240
        %v242 = vmul.f32 %v241, %v235
        %v243 = vadd.f32 %v242, 1e-12
        %v244 = vrsqrt.pop %v243
        %v245 = vmul.f32 %v237, %v244
        %v247 = vlaneseq
        %v248 = vshrl.u32 %v247, 7
        %v249 = vsub.s32 0, %v248
        %v250 = vrot.slane %v229, %v249
        %v252 = vmul.f32 %v245, %v250
        %v254 = vlaneseq
        %v255 = vshrl.u32 %v254, 7
        %v256 = vsub.s32 0, %v255
        %v257 = vrot.slane %v230, %v256
        %v259 = vadd.f32 %v252, %v257
        %260 = vst.msk [vmem:[%s225] sm:$0xff] %vm231, %v259
        %s261 = sand.u32 %s119, 1
        %s262 = scalar_lea.sflag [#allocation4], %s261
        %s263 = sand.u32 %s119, 1
        %s264 = smul.addr %s263, 8
        %s265 = scalar_lea.vmem [#allocation7], %s264
        // Predicated region
        $region45: #{tpu_custom_call.1} parent=35 // pred_check
          %p266 = pneg %p129
        $region46: #{tpu_custom_call.1} parent=35 // pred_check_branch
          %268 = sbr.rel (%p266) target = $region48
        $region47: #{tpu_custom_call.1} parent=35 // pred_region
          %s270 = ssub.s32 128, 128
          %271 = vsyncadd %s262, %s270
          %s272 = smul.addr %s22, 128
          %s273 = scalar_lea.hbm %s4, %s272
          %s275 = sshll.u32 %s265, 4
          %s276 = int_to_ptr.vmem [resolvable:$true] %s275
          %278 = dma.vmem_to_hbm [thread:$0]  %s276, 128, %s273, %s262
        $region48: #{tpu_custom_call.1} parent=35 // pred_fallthru
          _
      $region36: #{tpu_custom_call.1} parent=5 // pred_fallthru
        _
      %p279 = scmp.le.s32.totalorder 2, %s17
      // Predicated region
      $region49: #{tpu_custom_call.1} parent=5 // pred_check
        %p280 = pneg %p279
      $region50: #{tpu_custom_call.1} parent=5 // pred_check_branch
        %282 = sbr.rel (%p280) target = $region52
      $region51: #{tpu_custom_call.1} parent=5 // pred_region
        %s283 = ssub.s32 %s17, 2
        // Predicated region
        $region53: #{tpu_custom_call.1} parent=51 // pred_check
          %p284 = pneg %p135
        $region54: #{tpu_custom_call.1} parent=51 // pred_check_branch
          %286 = sbr.rel (%p284) target = $region56
        $region55: #{tpu_custom_call.1} parent=51 // pred_region
          %s287 = sand.u32 %s120, 1
          %s288 = scalar_lea.sflag [#allocation4], %s287
          %s289 = sand.u32 %s120, 1
          %s290 = smul.addr %s289, 8
          %s291 = scalar_lea.vmem [#allocation7], %s290
          %292 = dma.done %s288, 128
        $region56: #{tpu_custom_call.1} parent=51 // pred_fallthru
          _
      $region52: #{tpu_custom_call.1} parent=5 // pred_fallthru
        _
    $region6: #{tpu_custom_call.1} parent=1 // loop_footer
      %s21 = sadd.s32 1, %s17
    $region7: #{tpu_custom_call.1} parent=1 // loop_footer_branch
      %16 = sbr.rel target = $region3
    $region8: #{tpu_custom_call.1} parent=1 // loop_exit
      _
    %293 = vsyncpa [#allocation3], 1
    %s294 = scalar_lea.sflag [#allocation3], 1
    %295 = vsyncpa %s294, 1
    %296 = vsyncpa [#allocation6], 1
    %297 = vsyncpa [#allocation4], 1
    %s298 = scalar_lea.sflag [#allocation4], 1
    %299 = vsyncpa %s298, 1

</llo_original>
